<compile_context>
chip_gen: v7x
topology: tpu7x:2x2x1
jax: 0.10.0
libtpu: 0.0.40
codegen_flags: <defaults>
</compile_context>

<pallas_src>
import jax
import jax.numpy as jnp
from jax.experimental import pallas as pl
from jax.experimental.pallas import tpu as pltpu

LANE = 128
H1, H2 = 64, 32
H1A, H2A = 72, 40   # 64+8 / 32+8: sublane-aligned; the extra row carries the constant 1
FIN = 8             # 7 features + 1 constant-1 row (bias column of W1)


def _round_up(n, m):
    return ((n + m - 1) // m) * m


def _default_tb_cap():
    """Per-generation cap on the lane (batch) tile."""
    try:
        kind = jax.devices()[0].device_kind.lower()
    except Exception:
        return 8192
    if "v5" in kind or "v6" in kind:
        return 32768          # 128 MiB VMEM: fat tiles, ~22 MiB live
    return 8192               # v7x (64 MiB VMEM) / unknown: conservative


def _choose_tile(B, tb_cap):
    bp0 = _round_up(max(B, 1), LANE)
    if bp0 <= LANE:
        tb = LANE
    else:
        # Keep >= 2 grid steps when the batch allows it (megacore sharding on v7x);
        # once tiles are large the extra step is negligible on single-TC chips.
        tb = max(LANE, min(tb_cap, _round_up((bp0 + 1) // 2, LANE)))
    bp = _round_up(bp0, tb)
    return tb, bp, bp // tb


def titanic_mlp_kernel(x_ref, w1_ref, w2_ref, w3_ref, o_ref):
    xt = x_ref[...]                                                       # (8, TB) bf16, row 7 == 1

    # fc1 (+ folded bias) + relu -- bf16 MXU operands, f32 accumulate / f32 elementwise.
    h1 = jnp.dot(w1_ref[...], xt, preferred_element_type=jnp.float32)     # (72, TB)
    h1 = jnp.maximum(h1, 0.0).astype(jnp.bfloat16)                        # row 64 stays == 1

    # fc2 (+ folded bias) + relu
    h2 = jnp.dot(w2_ref[...], h1, preferred_element_type=jnp.float32)     # (40, TB)
    h2 = jnp.maximum(h2, 0.0).astype(jnp.bfloat16)                        # row 32 stays == 1

    # fc3 (+ folded bias) + sigmoid  (exp and reciprocal both go to the EUP slot)
    z = jnp.dot(w3_ref[...], h2, preferred_element_type=jnp.float32)      # (1, TB)
    o_ref[...] = pl.reciprocal(1.0 + jnp.exp(-z), approx=True)


def titanic_net_forward(x, params, *, tb_max=None):
    """x: (B, 7) float32.  params use PyTorch-native layout:
       w1 (64,7), b1 (64,1), w2 (32,64), b2 (32,1), w3 (1,32), b3 (1,1)."""
    w1, b1 = params["w1"], params["b1"]
    w2, b2 = params["w2"], params["b2"]
    w3, b3 = params["w3"], params["b3"]
    B = x.shape[0]

    tb_cap = _default_tb_cap() if tb_max is None else tb_max
    tb, bp, n_steps = _choose_tile(B, tb_cap)

    # Transposed, padded (features 7 -> 8 with a constant-1 bias row, batch B -> bp),
    # bf16 input.  With allow_input_fusion this prep fuses into the kernel's input DMA.
    xt = jnp.zeros((FIN, bp), jnp.bfloat16)
    xt = xt.at[7, :].set(jnp.bfloat16(1.0))
    xt = xt.at[:7, :B].set(x.T.astype(jnp.bfloat16))

    # Augmented weights: bias folded in as an extra column; one extra row per layer
    # propagates the constant 1 (relu(1) == 1) so later biases fold in too.
    w1a = jnp.zeros((H1A, FIN), jnp.float32)
    w1a = w1a.at[:H1, :7].set(w1)
    w1a = w1a.at[:H1, 7].set(b1[:, 0])
    w1a = w1a.at[H1, 7].set(1.0)

    w2a = jnp.zeros((H2A, H1A), jnp.float32)
    w2a = w2a.at[:H2, :H1].set(w2)
    w2a = w2a.at[:H2, H1].set(b2[:, 0])
    w2a = w2a.at[H2, H1].set(1.0)

    w3a = jnp.zeros((1, H2A), jnp.float32)
    w3a = w3a.at[0, :H2].set(w3[0])
    w3a = w3a.at[0, H2].set(b3[0, 0])

    w1b = w1a.astype(jnp.bfloat16)
    w2b = w2a.astype(jnp.bfloat16)
    w3b = w3a.astype(jnp.bfloat16)

    resident = lambda shape: pl.BlockSpec(shape, lambda i: (0, 0))

    cost = pl.CostEstimate(
        flops=2 * bp * (FIN * H1A + H1A * H2A + H2A * 1),
        transcendentals=2 * bp,
        bytes_accessed=(xt.size * 2 + bp * 4
                        + (w1b.size + w2b.size + w3b.size) * 2),
    )

    vmem_limit = 64 * 1024 * 1024 if tb > 8192 else 32 * 1024 * 1024

    out_t = pl.pallas_call(
        titanic_mlp_kernel,
        out_shape=jax.ShapeDtypeStruct((1, bp), jnp.float32),
        grid_spec=pltpu.PrefetchScalarGridSpec(
            num_scalar_prefetch=0,
            grid=(n_steps,),
            in_specs=[
                pl.BlockSpec((FIN, tb), lambda i: (0, i)),  # x tile, batch on lanes
                resident((H1A, FIN)),                       # W1 (+b1), VMEM-resident
                resident((H2A, H1A)),                       # W2 (+b2)
                resident((1, H2A)),                         # W3 (+b3)
            ],
            out_specs=pl.BlockSpec((1, tb), lambda i: (0, i)),
        ),
        compiler_params=pltpu.CompilerParams(
            dimension_semantics=("parallel",),
            vmem_limit_bytes=vmem_limit,
            allow_input_fusion=[True, False, False, False],
        ),
        cost_estimate=cost,
    )(xt, w1b, w2b, w3b)

    return out_t[:, :B].T                                                 # (B, 1)


def titanic_net_reference(x, params):
    """Pure-JAX f32 reference matching the PyTorch forward pass."""
    h1 = jnp.maximum(x @ params["w1"].T + params["b1"][:, 0], 0.0)
    h2 = jnp.maximum(h1 @ params["w2"].T + params["b2"][:, 0], 0.0)
    z = h2 @ params["w3"].T + params["b3"][:, 0]
    return jax.nn.sigmoid(z)


def init_params(key):
    """Deterministic init mimicking nn.Linear's uniform(-1/sqrt(fan_in), ...).
       PyTorch-native shapes: weight (out, in), bias stored as (out, 1)."""
    dims = [(7, 64), (64, 32), (32, 1)]
    params = {}
    for i, (fan_in, fan_out) in enumerate(dims, start=1):
        key, kw, kb = jax.random.split(key, 3)
        bound = 1.0 / jnp.sqrt(jnp.float32(fan_in))
        params[f"w{i}"] = jax.random.uniform(
            kw, (fan_out, fan_in), jnp.float32, -bound, bound)
        params[f"b{i}"] = jax.random.uniform(
            kb, (fan_out, 1), jnp.float32, -bound, bound)
    return params


if __name__ == "__main__":
    key = jax.random.PRNGKey(0)
    key, kx = jax.random.split(key)

    B = 8
    x = jax.random.normal(kx, (B, 7), dtype=jnp.float32)
    params = init_params(key)

    fwd = jax.jit(titanic_net_forward)          # keeps input prep + kernel in one XLA program
    out = jax.block_until_ready(fwd(x, params))
    ref = titanic_net_reference(x, params)

    assert out.shape == (B, 1)
    assert bool(jnp.all(jnp.isfinite(out)))
    assert bool(jnp.all((out > -1e-6) & (out < 1.0 + 1e-6)))
    assert bool(jnp.allclose(out, ref, atol=2e-2, rtol=0.0)), (
        f"max abs diff {float(jnp.max(jnp.abs(out - ref)))}")

    print("KERNEL_OK")
</pallas_src>

<mosaic_0001>
module attributes {stable_mosaic.version = 11 : i64} {
  func.func @titanic_mlp_kernel(%arg0: i32, %arg1: memref<8x128xbf16, #tpu.memory_space<vmem>>, %arg2: memref<72x8xbf16, #tpu.memory_space<vmem>>, %arg3: memref<40x72xbf16, #tpu.memory_space<vmem>>, %arg4: memref<1x40xbf16, #tpu.memory_space<vmem>>, %arg5: memref<1x128xf32, #tpu.memory_space<vmem>>) attributes {dimension_semantics = [#tpu.dimension_semantics<parallel>], iteration_bounds = array<i64: 1>, scalar_prefetch = 0 : i64, scratch_operands = 0 : i64, tpu.core_type = #tpu.core_type<tc>, window_params = [{transform_indices = @transform_0, window_bounds = array<i64: 8, 128>}, {pipeline_mode = #tpu.pipeline_mode<synchronous>, transform_indices = @transform_1, window_bounds = array<i64: 72, 8>}, {pipeline_mode = #tpu.pipeline_mode<synchronous>, transform_indices = @transform_2, window_bounds = array<i64: 40, 72>}, {pipeline_mode = #tpu.pipeline_mode<synchronous>, transform_indices = @transform_3, window_bounds = array<i64: 1, 40>}, {transform_indices = @transform_4, window_bounds = array<i64: 1, 128>}]} {
    %c0 = arith.constant 0 : index
    %c0_0 = arith.constant 0 : index
    %0 = vector.load %arg1[%c0, %c0_0] : memref<8x128xbf16, #tpu.memory_space<vmem>>, vector<8x128xbf16>
    %c0_1 = arith.constant 0 : index
    %c0_2 = arith.constant 0 : index
    %1 = vector.load %arg2[%c0_1, %c0_2] : memref<72x8xbf16, #tpu.memory_space<vmem>>, vector<72x8xbf16>
    %cst = arith.constant dense<0.000000e+00> : vector<72x128xf32>
    %2 = tpu.matmul %1, %0, %cst {dimension_numbers = #tpu.dot_dimension_numbers<[1], [0], [0], [1], [0, 0, 1, 1], [], []>} : vector<72x8xbf16>, vector<8x128xbf16>, vector<72x128xf32> -> vector<72x128xf32>
    %cst_3 = arith.constant 0.000000e+00 : f32
    %3 = vector.broadcast %cst_3 : f32 to vector<72x128xf32>
    %4 = arith.maximumf %2, %3 : vector<72x128xf32>
    %5 = arith.truncf %4 : vector<72x128xf32> to vector<72x128xbf16>
    %c0_4 = arith.constant 0 : index
    %c0_5 = arith.constant 0 : index
    %6 = vector.load %arg3[%c0_4, %c0_5] : memref<40x72xbf16, #tpu.memory_space<vmem>>, vector<40x72xbf16>
    %cst_6 = arith.constant dense<0.000000e+00> : vector<40x128xf32>
    %7 = tpu.matmul %6, %5, %cst_6 {dimension_numbers = #tpu.dot_dimension_numbers<[1], [0], [0], [1], [0, 0, 1, 1], [], []>} : vector<40x72xbf16>, vector<72x128xbf16>, vector<40x128xf32> -> vector<40x128xf32>
    %cst_7 = arith.constant 0.000000e+00 : f32
    %8 = vector.broadcast %cst_7 : f32 to vector<40x128xf32>
    %9 = arith.maximumf %7, %8 : vector<40x128xf32>
    %10 = arith.truncf %9 : vector<40x128xf32> to vector<40x128xbf16>
    %c0_8 = arith.constant 0 : index
    %c0_9 = arith.constant 0 : index
    %11 = vector.load %arg4[%c0_8, %c0_9] : memref<1x40xbf16, #tpu.memory_space<vmem>>, vector<1x40xbf16>
    %cst_10 = arith.constant dense<0.000000e+00> : vector<1x128xf32>
    %12 = tpu.matmul %11, %10, %cst_10 {dimension_numbers = #tpu.dot_dimension_numbers<[1], [0], [0], [1], [0, 0, 1, 1], [], []>} : vector<1x40xbf16>, vector<40x128xbf16>, vector<1x128xf32> -> vector<1x128xf32>
    %cst_11 = arith.constant 0.000000e+00 : f32
    %13 = vector.broadcast %cst_11 : f32 to vector<1x128xf32>
    %14 = arith.subf %13, %12 : vector<1x128xf32>
    %15 = math.exp %14 : vector<1x128xf32>
    %cst_12 = arith.constant 1.000000e+00 : f32
    %16 = vector.broadcast %cst_12 : f32 to vector<1x128xf32>
    %17 = arith.addf %16, %15 : vector<1x128xf32>
    %18 = tpu.reciprocal %17 {approx = true} : vector<1x128xf32> -> vector<1x128xf32>
    %c0_13 = arith.constant 0 : index
    %c0_14 = arith.constant 0 : index
    %19 = vector.load %arg5[%c0_13, %c0_14] : memref<1x128xf32, #tpu.memory_space<vmem>>, vector<1x128xf32>
    tpu.vector_store %arg5[%c0_13, %c0_14], %18 {strides = array<i32>} : memref<1x128xf32, #tpu.memory_space<vmem>>, vector<1x128xf32>,
    return
  }
  func.func @transform_0(%arg0: i32) -> (i32, i32) {
    %c0_i32 = arith.constant 0 : i32
    %c0_i32_0 = arith.constant 0 : i32
    return %c0_i32, %arg0 : i32, i32
  }
  func.func @transform_1(%arg0: i32) -> (i32, i32) {
    %c0_i32 = arith.constant 0 : i32
    %c0_i32_0 = arith.constant 0 : i32
    %c0_i32_1 = arith.constant 0 : i32
    return %c0_i32, %c0_i32_0 : i32, i32
  }
  func.func @transform_2(%arg0: i32) -> (i32, i32) {
    %c0_i32 = arith.constant 0 : i32
    %c0_i32_0 = arith.constant 0 : i32
    %c0_i32_1 = arith.constant 0 : i32
    return %c0_i32, %c0_i32_0 : i32, i32
  }
  func.func @transform_3(%arg0: i32) -> (i32, i32) {
    %c0_i32 = arith.constant 0 : i32
    %c0_i32_0 = arith.constant 0 : i32
    %c0_i32_1 = arith.constant 0 : i32
    return %c0_i32, %c0_i32_0 : i32, i32
  }
  func.func @transform_4(%arg0: i32) -> (i32, i32) {
    %c0_i32 = arith.constant 0 : i32
    %c0_i32_0 = arith.constant 0 : i32
    return %c0_i32, %arg0 : i32, i32
  }
}

</mosaic_0001>

<llo_original>
// kernel: titanic_net_forward.1
$region0: #{titanic_net_forward.1}
  #allocation0 [shape = 'u32[]', space=smem, size = 0x4, offset = 0x4, fixed_abs, tag = 'smem constant byte address 0x4 - core index']
  #allocation1 [shape = 'u32[144,128]{1,0:T(1,128)}', space=vmem, size = 0x12000, scoped, tag = 'internal scratch']
  %s0 = inlined_call_operand.vmem [shape: bf16[8,128], index: 0, kind: input, shape index: {}]
  %s1 = inlined_call_operand.vmem [shape: bf16[72,8], index: 1, kind: input, shape index: {}]
  %s2 = inlined_call_operand.vmem [shape: bf16[40,72], index: 2, kind: input, shape index: {}]
  %s3 = inlined_call_operand.vmem [shape: bf16[1,40], index: 3, kind: input, shape index: {}]
  %s4 = inlined_call_operand.vmem [shape: f32[1,128], index: 4, kind: output, shape index: {}]
  %s5 = sld [smem:[#allocation0]]
  $region26: #{titanic_net_forward.1} parent=0
    _
  %s7 = ssub.s32 1, %s5
  %s8 = scalar_select 0, %s7, %s5
  // Predicated region
  $region2: #{titanic_net_forward.1} parent=0 // pred_check
    _
  $region3: #{titanic_net_forward.1} parent=0 // pred_check_branch
    %10 = sbr.rel (0) target = $region5
  $region4: #{titanic_net_forward.1} parent=0 // pred_region
    _
  $region5: #{titanic_net_forward.1} parent=0 // pred_fallthru
    _
  // Predicated region
  $region6: #{titanic_net_forward.1} parent=0 // pred_check
    _
  $region7: #{titanic_net_forward.1} parent=0 // pred_check_branch
    %12 = sbr.rel (0) target = $region9
  $region8: #{titanic_net_forward.1} parent=0 // pred_region
    _
  $region9: #{titanic_net_forward.1} parent=0 // pred_fallthru
    _
  // Predicated region
  $region10: #{titanic_net_forward.1} parent=0 // pred_check
    _
  $region11: #{titanic_net_forward.1} parent=0 // pred_check_branch
    %14 = sbr.rel (0) target = $region13
  $region12: #{titanic_net_forward.1} parent=0 // pred_region
    _
  $region13: #{titanic_net_forward.1} parent=0 // pred_fallthru
    _
  // Predicated region
  $region14: #{titanic_net_forward.1} parent=0 // pred_check
    _
  $region15: #{titanic_net_forward.1} parent=0 // pred_check_branch
    %16 = sbr.rel (0) target = $region17
  $region16: #{titanic_net_forward.1} parent=0 // pred_region
    _
  $region17: #{titanic_net_forward.1} parent=0 // pred_fallthru
    _
  %v18 = vld [vmem:[%s0] sm:$0xf]
  %v19 = vld [vmem:[%s1] sm:$0xf]
  %v20 = vld [vmem:[%s1 + $0x4] sm:$0xf]
  %v21 = vld [vmem:[%s1 + $0x8] sm:$0xf]
  %v22 = vld [vmem:[%s1 + $0xc] sm:$0xf]
  %v23 = vld [vmem:[%s1 + $0x10] sm:$0xf]
  %v24 = vld [vmem:[%s1 + $0x14] sm:$0xf]
  %v25 = vld [vmem:[%s1 + $0x18] sm:$0xf]
  %v26 = vld [vmem:[%s1 + $0x1c] sm:$0xf]
  %v27 = vld [vmem:[%s1 + $0x20] sm:$0xf]
  %v37 = vunpack.c.l.b16 %v19
  %v38 = vunpack.c.l.b16 %v20
  %v39 = vunpack.c.l.b16 %v21
  %v40 = vunpack.c.l.b16 %v22
  %v41 = vunpack.c.l.b16 %v23
  %v42 = vunpack.c.l.b16 %v24
  %v43 = vunpack.c.l.b16 %v25
  %v44 = vunpack.c.l.b16 %v26
  %v45 = vunpack.c.l.b16 %v27
  %v46 = vpack.c.b16 %v38, %v37
  %v47 = vpack.c.b16 %v40, %v39
  %v48 = vpack.c.b16 %v42, %v41
  %v49 = vpack.c.b16 %v44, %v43
  %v50 = vpack.c.b16 %v45, %v45
  %vm51 = vcmask 64512
  %v53 = vsel %vm51, %v46, 0
  %v56 = vsel %vm51, %v47, 0
  %v59 = vsel %vm51, %v48, 0
  %v62 = vsel %vm51, %v49, 0
  %v65 = vsel %vm51, %v50, 0
  %vm67 = vcmask 1043456
  %v69 = vsel %vm67, %v18, 0
  %71 = vmatprep.subr.bf16.mxu0 0
  %72 = vmatpush1.bf16.msra.mxu0 %v69
  %73 = vmatprep.subr.bf16.mxu0 0
  %74 = vmatpush1.bf16.msra.mxu0 0
  %75 = vmatprep.subr.bf16.mxu0 0
  %76 = vmatpush1.bf16.msra.mxu0 0
  %77 = vmatprep.subr.bf16.mxu0 0
  %78 = vmatpush1.bf16.msra.mxu0 0
  %79 = vmatprep.subr.bf16.mxu0 0
  %80 = vmatpush1.bf16.msra.mxu0 0
  %81 = vmatprep.subr.bf16.mxu0 0
  %82 = vmatpush1.bf16.msra.mxu0 0
  %83 = vmatprep.subr.bf16.mxu0 0
  %84 = vmatpush1.bf16.msra.mxu0 0
  %85 = vmatprep.subr.bf16.mxu0 0
  %86 = vmatpush1.bf16.msra.mxu0 0
  %87 = vmatprep.subr.bf16.mxu0 0
  %88 = vmatpush1.bf16.msra.mxu0 0
  %89 = vmatprep.subr.bf16.mxu0 0
  %90 = vmatpush1.bf16.msra.mxu0 0
  %91 = vmatprep.subr.bf16.mxu0 0
  %92 = vmatpush1.bf16.msra.mxu0 0
  %93 = vmatprep.subr.bf16.mxu0 0
  %94 = vmatpush1.bf16.msra.mxu0 0
  %95 = vmatprep.subr.bf16.mxu0 0
  %96 = vmatpush1.bf16.msra.mxu0 0
  %97 = vmatprep.subr.bf16.mxu0 0
  %98 = vmatpush1.bf16.msra.mxu0 0
  %99 = vmatprep.subr.bf16.mxu0 0
  %100 = vmatpush1.bf16.msra.mxu0 0
  %101 = vmatprep.subr.bf16.mxu0 0
  %102 = vmatpush1.bf16.msra.mxu0 0
  %103 = vmatprep.mubr.bf16.mxu0 0
  %104 = vmatmul.mubr.bf16.gmra.mrb[0].mxu0 %v53
  %v105 = vpop.f32.mrb[0].mxu0
  %v106 = vadd.f32 0.0, %v105
  %v107 = vpop.f32.mrb[0].mxu0
  %v108 = vpop.f32.mrb[0].mxu0
  %v109 = vadd.f32 0.0, %v108
  %v110 = vpop.f32.mrb[0].mxu0
  %111 = vmatprep.mubr.bf16.mxu0 0
  %112 = vmatmul.mubr.bf16.gmra.mrb[0].mxu0 %v56
  %v113 = vpop.f32.mrb[0].mxu0
  %v114 = vadd.f32 0.0, %v113
  %v115 = vpop.f32.mrb[0].mxu0
  %v116 = vpop.f32.mrb[0].mxu0
  %v117 = vadd.f32 0.0, %v116
  %v118 = vpop.f32.mrb[0].mxu0
  %119 = vmatprep.mubr.bf16.mxu0 0
  %120 = vmatmul.mubr.bf16.gmra.mrb[0].mxu0 %v59
  %v121 = vpop.f32.mrb[0].mxu0
  %v122 = vadd.f32 0.0, %v121
  %v123 = vpop.f32.mrb[0].mxu0
  %v124 = vpop.f32.mrb[0].mxu0
  %v125 = vadd.f32 0.0, %v124
  %v126 = vpop.f32.mrb[0].mxu0
  %127 = vmatprep.mubr.bf16.mxu0 0
  %128 = vmatmul.mubr.bf16.gmra.mrb[0].mxu0 %v62
  %v129 = vpop.f32.mrb[0].mxu0
  %v130 = vadd.f32 0.0, %v129
  %v131 = vpop.f32.mrb[0].mxu0
  %v132 = vpop.f32.mrb[0].mxu0
  %v133 = vadd.f32 0.0, %v132
  %v134 = vpop.f32.mrb[0].mxu0
  %135 = vmatprep.mubr.bf16.mxu0 0
  %136 = vmatmul.mubr.bf16.gmra.mrb[0].mxu0 %v65
  %v137 = vpop.f32.mrb[0].mxu0
  %v138 = vadd.f32 0.0, %v137
  %v139 = vpop.f32.mrb[0].mxu0
  %v140 = vpop.f32.mrb[0].mxu0
  %v141 = vpop.f32.mrb[0].mxu0
  %142 = vdwg.mxu0
  %v143 = vmax.f32 %v106, 0.0
  %v144 = vmax.f32 %v109, 0.0
  %v145 = vmax.f32 %v114, 0.0
  %v146 = vmax.f32 %v117, 0.0
  %v147 = vmax.f32 %v122, 0.0
  %v148 = vmax.f32 %v125, 0.0
  %v149 = vmax.f32 %v130, 0.0
  %v150 = vmax.f32 %v133, 0.0
  %v151 = vmax.f32 %v138, 0.0
  %v152 = vpack.c.bf16 %v144, %v143
  %v153 = vpack.c.bf16 %v146, %v145
  %v154 = vpack.c.bf16 %v148, %v147
  %v155 = vpack.c.bf16 %v150, %v149
  %v156 = vpack.c.bf16 %v151, %v151
  %v157 = vld [vmem:[%s2] sm:$0xf]
  %v158 = vld [vmem:[%s2 + $0x4] sm:$0xf]
  %v159 = vld [vmem:[%s2 + $0x8] sm:$0xf]
  %v160 = vld [vmem:[%s2 + $0xc] sm:$0xf]
  %v161 = vld [vmem:[%s2 + $0x10] sm:$0xf]
  %v167 = vunpack.c.l.b16 %v157
  %v168 = vunpack.c.l.b16 %v158
  %v169 = vunpack.c.l.b16 %v159
  %v170 = vunpack.c.l.b16 %v160
  %v171 = vunpack.c.l.b16 %v161
  %v172 = vpack.c.b16 %v168, %v167
  %v173 = vpack.c.b16 %v170, %v169
  %v174 = vpack.c.b16 %v171, %v171
  %vm175 = vcmask 588800
  %v177 = vsel %vm175, %v172, 0
  %v180 = vsel %vm175, %v173, 0
  %v183 = vsel %vm175, %v174, 0
  %v186 = vsel %vm67, %v156, 0
  %188 = vmatprep.subr.bf16.mxu0 0
  %189 = vmatpush1.bf16.msra.mxu0 %v152
  %190 = vmatprep.subr.bf16.mxu0 0
  %191 = vmatpush1.bf16.msra.mxu0 %v153
  %192 = vmatprep.subr.bf16.mxu0 0
  %193 = vmatpush1.bf16.msra.mxu0 %v154
  %194 = vmatprep.subr.bf16.mxu0 0
  %195 = vmatpush1.bf16.msra.mxu0 %v155
  %196 = vmatprep.subr.bf16.mxu0 0
  %197 = vmatpush1.bf16.msra.mxu0 %v186
  %198 = vmatprep.subr.bf16.mxu0 0
  %199 = vmatpush1.bf16.msra.mxu0 0
  %200 = vmatprep.subr.bf16.mxu0 0
  %201 = vmatpush1.bf16.msra.mxu0 0
  %202 = vmatprep.subr.bf16.mxu0 0
  %203 = vmatpush1.bf16.msra.mxu0 0
  %204 = vmatprep.subr.bf16.mxu0 0
  %205 = vmatpush1.bf16.msra.mxu0 0
  %206 = vmatprep.subr.bf16.mxu0 0
  %207 = vmatpush1.bf16.msra.mxu0 0
  %208 = vmatprep.subr.bf16.mxu0 0
  %209 = vmatpush1.bf16.msra.mxu0 0
  %210 = vmatprep.subr.bf16.mxu0 0
  %211 = vmatpush1.bf16.msra.mxu0 0
  %212 = vmatprep.subr.bf16.mxu0 0
  %213 = vmatpush1.bf16.msra.mxu0 0
  %214 = vmatprep.subr.bf16.mxu0 0
  %215 = vmatpush1.bf16.msra.mxu0 0
  %216 = vmatprep.subr.bf16.mxu0 0
  %217 = vmatpush1.bf16.msra.mxu0 0
  %218 = vmatprep.subr.bf16.mxu0 0
  %219 = vmatpush1.bf16.msra.mxu0 0
  %220 = vmatprep.mubr.bf16.mxu0 0
  %221 = vmatmul.mubr.bf16.gmra.mrb[0].mxu0 %v177
  %v222 = vpop.f32.mrb[0].mxu0
  %v223 = vadd.f32 0.0, %v222
  %v224 = vpop.f32.mrb[0].mxu0
  %v225 = vpop.f32.mrb[0].mxu0
  %v226 = vadd.f32 0.0, %v225
  %v227 = vpop.f32.mrb[0].mxu0
  %228 = vmatprep.mubr.bf16.mxu0 0
  %229 = vmatmul.mubr.bf16.gmra.mrb[0].mxu0 %v180
  %v230 = vpop.f32.mrb[0].mxu0
  %v231 = vadd.f32 0.0, %v230
  %v232 = vpop.f32.mrb[0].mxu0
  %v233 = vpop.f32.mrb[0].mxu0
  %v234 = vadd.f32 0.0, %v233
  %v235 = vpop.f32.mrb[0].mxu0
  %236 = vmatprep.mubr.bf16.mxu0 0
  %237 = vmatmul.mubr.bf16.gmra.mrb[0].mxu0 %v183
  %v238 = vpop.f32.mrb[0].mxu0
  %v239 = vadd.f32 0.0, %v238
  %v240 = vpop.f32.mrb[0].mxu0
  %v241 = vpop.f32.mrb[0].mxu0
  %v242 = vpop.f32.mrb[0].mxu0
  %243 = vdwg.mxu0
  %v244 = vmax.f32 %v223, 0.0
  %v245 = vmax.f32 %v226, 0.0
  %v246 = vmax.f32 %v231, 0.0
  %v247 = vmax.f32 %v234, 0.0
  %v248 = vmax.f32 %v239, 0.0
  %v249 = vpack.c.bf16 %v245, %v244
  %v250 = vpack.c.bf16 %v247, %v246
  %v251 = vpack.c.bf16 %v248, %v248
  %v252 = vld [vmem:[%s3] sm:$0x1]
  %vm253 = vcmask 326656
  %v255 = vsel %vm253, %v252, 0
  %v258 = vsel %vm67, %v251, 0
  %260 = vmatprep.subr.bf16.mxu0 0
  %261 = vmatpush1.bf16.msra.mxu0 %v249
  %262 = vmatprep.subr.bf16.mxu0 0
  %263 = vmatpush1.bf16.msra.mxu0 %v250
  %264 = vmatprep.subr.bf16.mxu0 0
  %265 = vmatpush1.bf16.msra.mxu0 %v258
  %266 = vmatprep.subr.bf16.mxu0 0
  %267 = vmatpush1.bf16.msra.mxu0 0
  %268 = vmatprep.subr.bf16.mxu0 0
  %269 = vmatpush1.bf16.msra.mxu0 0
  %270 = vmatprep.subr.bf16.mxu0 0
  %271 = vmatpush1.bf16.msra.mxu0 0
  %272 = vmatprep.subr.bf16.mxu0 0
  %273 = vmatpush1.bf16.msra.mxu0 0
  %274 = vmatprep.subr.bf16.mxu0 0
  %275 = vmatpush1.bf16.msra.mxu0 0
  %276 = vmatprep.subr.bf16.mxu0 0
  %277 = vmatpush1.bf16.msra.mxu0 0
  %278 = vmatprep.subr.bf16.mxu0 0
  %279 = vmatpush1.bf16.msra.mxu0 0
  %280 = vmatprep.subr.bf16.mxu0 0
  %281 = vmatpush1.bf16.msra.mxu0 0
  %282 = vmatprep.subr.bf16.mxu0 0
  %283 = vmatpush1.bf16.msra.mxu0 0
  %284 = vmatprep.subr.bf16.mxu0 0
  %285 = vmatpush1.bf16.msra.mxu0 0
  %286 = vmatprep.subr.bf16.mxu0 0
  %287 = vmatpush1.bf16.msra.mxu0 0
  %288 = vmatprep.subr.bf16.mxu0 0
  %289 = vmatpush1.bf16.msra.mxu0 0
  %290 = vmatprep.subr.bf16.mxu0 0
  %291 = vmatpush1.bf16.msra.mxu0 0
  %292 = vmatprep.mubr.bf16.mxu0 0
  %293 = vmatmul.mubr.bf16.gmra.mrb[0].mxu0 %v255
  %v294 = vpop.f32.mrb[0].mxu0
  %v295 = vadd.f32 0.0, %v294
  %v296 = vpop.f32.mrb[0].mxu0
  %v297 = vpop.f32.mrb[0].mxu0
  %v298 = vpop.f32.mrb[0].mxu0
  %299 = vdwg.mxu0
  %v300 = vsub.f32 0.0, %v295
  %v301 = vmul.f32 %v300, 1.442695
  %v302 = vpow.pop %v301
  %v303 = vadd.f32 %v302, 1.0
  %v304 = vrcp.pop %v303
  %305 = vst [vmem:[%s4] sm:$0x1] %v304
  // Predicated region
  $region18: #{titanic_net_forward.1} parent=0 // pred_check
    _
  $region19: #{titanic_net_forward.1} parent=0 // pred_check_branch
    %307 = sbr.rel (0) target = $region21
  $region20: #{titanic_net_forward.1} parent=0 // pred_region
    _
  $region21: #{titanic_net_forward.1} parent=0 // pred_fallthru
    _
  // Predicated region
  $region22: #{titanic_net_forward.1} parent=0 // pred_check
    _
  $region23: #{titanic_net_forward.1} parent=0 // pred_check_branch
    %309 = sbr.rel (0) target = $region25
  $region24: #{titanic_net_forward.1} parent=0 // pred_region
    _
  $region25: #{titanic_net_forward.1} parent=0 // pred_fallthru
    _

</llo_original>
